<compile_context>
chip_gen: v7x
topology: tpu7x:2x2x1
jax: 0.10.0
libtpu: 0.0.40
codegen_flags: <defaults>
</compile_context>

<pallas_src>
import functools
import math

import jax
import jax.numpy as jnp
from jax import lax
from jax.experimental import pallas as pl
from jax.experimental.pallas import tpu as pltpu


_MAX_TILE_ELEMS = 2048 * 512   # 4 MiB f32 per input buffer (2 inputs x 2 bufs = 16 MiB)


def _round_up(x, m):
    return (x + m - 1) // m * m


def _int_pow(v, g):
    """v**g via repeated multiplies for small integer g (no exp/log pair)."""
    gi = int(g)
    if float(gi) == float(g) and 0 <= gi <= 8:
        if gi == 0:
            return jnp.ones_like(v)
        out = v
        for _ in range(gi - 1):
            out = out * v
        return out
    return v ** jnp.float32(g)


def _focal_loss_kernel(pred_ref, mask_ref, out_ref, *, gamma, alpha,
                       tile_rows, valid_rows, need_row_mask):
    step = pl.program_id(0)

    @pl.when(step == 0)
    def _init():
        out_ref[...] = jnp.zeros_like(out_ref)

    x = pred_ref[...].astype(jnp.float32)
    m = mask_ref[...].astype(jnp.float32)

    # Stable sigmoid / log-sigmoid with shared sub-expressions:
    #   t = exp(-|x|)
    #   -log p      = log(1 + t) - min(x, 0)
    #   -log(1 - p) = -log p + x
    #   p = sigmoid(x), 1 - p = sigmoid(-x)
    s = x >= 0.0
    t = jnp.exp(-jnp.abs(x))
    one_plus_t = 1.0 + t
    lg = jnp.log(one_plus_t)
    inv = pl.reciprocal(one_plus_t, approx=True)   # EUP rcp — frees VALU slots
    neg_log_p = lg - jnp.minimum(x, 0.0)

    # mask assumed binary {0,1} (segmentation mask), so the linear blend of the
    # two focal terms collapses to a single select.
    is_pos = m > 0.0
    # base = (1 - p) on positives, p on negatives (single select, shared inv).
    base = jnp.where(is_pos == s, t, 1.0) * inv
    w = _int_pow(base, gamma)
    nl = neg_log_p + jnp.where(is_pos, 0.0, x)     # -log p  or  -log(1 - p)
    coef = jnp.where(is_pos, jnp.float32(alpha), jnp.float32(1.0 - alpha))
    loss = coef * w * nl

    if need_row_mask:
        # Zero the garbage rows of the partial last tile (grid overshoot).
        row = lax.broadcasted_iota(jnp.int32, loss.shape, 0) + step * tile_rows
        loss = jnp.where(row < valid_rows, loss, 0.0)

    # Sublane-only partial reduce into the resident (1, L) accumulator; the
    # cross-lane collapse happens once in the wrapper epilogue.
    out_ref[...] += jnp.sum(loss, axis=0, keepdims=True)


def _pick_lanes(numel):
    for lanes in (512, 256, 128):
        if numel % lanes == 0:
            return lanes
    return 0


@functools.partial(jax.jit, static_argnames=("gamma", "alpha"))
def focal_loss(pred, mask, gamma=2.0, alpha=0.25):
    """pred, mask: [B, 1, H, W] -> scalar f32 loss (matches PyTorch FocalLoss)."""
    assert pred.shape == mask.shape, "pred and mask should have the same shape."
    numel = int(math.prod(pred.shape))

    L = _pick_lanes(numel)
    if L:
        rows_total = numel // L
        pred2d = pred.reshape(rows_total, L)      # bitcast reshape, no HBM copy
        mask2d = mask.reshape(rows_total, L)
    else:
        # TODO(synk): rare ragged case (numel not a multiple of 128) — this pad
        # materializes one full-array copy; padded elems are loss-neutral.
        L = 128
        padded = _round_up(numel, L)
        rows_total = padded // L
        pred2d = jnp.pad(pred.reshape(-1), (0, padded - numel),
                         constant_values=-30.0).reshape(rows_total, L)
        mask2d = jnp.pad(mask.reshape(-1), (0, padded - numel)
                         ).reshape(rows_total, L)

    max_rows = max(8, _MAX_TILE_ELEMS // L)
    if rows_total <= max_rows:
        tile_rows = rows_total      # block == full dim -> always a legal tile
        grid = 1
    else:
        tile_rows = max_rows        # multiple of 32 (int8/bf16/f32 sublane packs)
        grid = pl.cdiv(rows_total, tile_rows)
    need_row_mask = (grid * tile_rows != rows_total)

    kernel = functools.partial(
        _focal_loss_kernel, gamma=float(gamma), alpha=float(alpha),
        tile_rows=tile_rows, valid_rows=rows_total, need_row_mask=need_row_mask)

    partial_sums = pl.pallas_call(
        kernel,
        out_shape=jax.ShapeDtypeStruct((1, L), jnp.float32),
        grid_spec=pltpu.PrefetchScalarGridSpec(
            num_scalar_prefetch=0,
            grid=(grid,),
            in_specs=[
                pl.BlockSpec((tile_rows, L), lambda i: (i, 0)),
                pl.BlockSpec((tile_rows, L), lambda i: (i, 0)),
            ],
            out_specs=pl.BlockSpec((1, L), lambda i: (0, 0)),
        ),
        compiler_params=pltpu.CompilerParams(
            dimension_semantics=("arbitrary",),
            vmem_limit_bytes=48 * 1024 * 1024,
        ),
    )(pred2d, mask2d)

    # Tiny epilogue (fused under jit): lane collapse + constant denominator
    # (num_pos + num_neg == numel by construction).
    inv_denom = 1.0 / (float(numel) + 1e-12)
    return jnp.sum(partial_sums) * jnp.float32(inv_denom)


def _focal_loss_ref(pred, mask, gamma=2.0, alpha=0.25):
    # Literal transcription of the PyTorch module (spec).
    p = jax.nn.sigmoid(pred.astype(jnp.float32))
    m = mask.astype(jnp.float32)
    num_pos = jnp.sum(m)
    num_neg = m.size - num_pos
    w_pos = (1.0 - p) ** gamma
    w_neg = p ** gamma
    loss_pos = -alpha * m * w_pos * jnp.log(p + 1e-12)
    loss_neg = -(1.0 - alpha) * (1.0 - m) * w_neg * jnp.log(1.0 - p + 1e-12)
    return (jnp.sum(loss_pos) + jnp.sum(loss_neg)) / (num_pos + num_neg + 1e-12)


if __name__ == "__main__":
    key = jax.random.PRNGKey(0)
    k_pred, k_mask = jax.random.split(key)

    B, C, H, W = 2, 1, 16, 16
    pred = jax.random.normal(k_pred, (B, C, H, W), dtype=jnp.float32)
    mask = (jax.random.uniform(k_mask, (B, C, H, W)) > 0.5).astype(jnp.float32)

    loss = focal_loss(pred, mask, gamma=2.0, alpha=0.25)
    loss = jax.block_until_ready(loss)

    ref = _focal_loss_ref(pred, mask, gamma=2.0, alpha=0.25)
    # The log-sigmoid form drops the reference's +1e-12 inside the logs and the
    # approx EUP reciprocal perturbs the focal weights in low-order bits;
    # tolerance loosened accordingly (formula errors would be O(1) off).
    assert jnp.allclose(loss, ref, rtol=3e-3, atol=1e-5), (loss, ref)

    print("KERNEL_OK")
</pallas_src>

<mosaic_0001>
module attributes {stable_mosaic.version = 11 : i64} {
  func.func @_focal_loss_kernel(%arg0: i32, %arg1: memref<1x512xf32, #tpu.memory_space<vmem>>, %arg2: memref<1x512xf32, #tpu.memory_space<vmem>>, %arg3: memref<1x512xf32, #tpu.memory_space<vmem>>) attributes {dimension_semantics = [#tpu.dimension_semantics<arbitrary>], iteration_bounds = array<i64: 1>, scalar_prefetch = 0 : i64, scratch_operands = 0 : i64, tpu.core_type = #tpu.core_type<tc>, window_params = [{transform_indices = @transform_0, window_bounds = array<i64: 1, 512>}, {transform_indices = @transform_1, window_bounds = array<i64: 1, 512>}, {pipeline_mode = #tpu.pipeline_mode<synchronous>, transform_indices = @transform_2, window_bounds = array<i64: 1, 512>}]} {
    %c0_i32 = arith.constant 0 : i32
    %0 = arith.cmpi eq, %arg0, %c0_i32 : i32
    %1 = arith.extui %0 : i1 to i32
    %c0_i32_0 = arith.constant 0 : i32
    %2 = arith.cmpi ne, %1, %c0_i32_0 : i32
    scf.if %2 {
      %cst_18 = arith.constant 0.000000e+00 : f32
      %39 = vector.broadcast %cst_18 : f32 to vector<1x512xf32>
      %c0_19 = arith.constant 0 : index
      %c0_20 = arith.constant 0 : index
      %40 = vector.load %arg3[%c0_19, %c0_20] : memref<1x512xf32, #tpu.memory_space<vmem>>, vector<1x512xf32>
      tpu.vector_store %arg3[%c0_19, %c0_20], %39 {strides = array<i32>} : memref<1x512xf32, #tpu.memory_space<vmem>>, vector<1x512xf32>,
    } else {
    }
    %c0 = arith.constant 0 : index
    %c0_1 = arith.constant 0 : index
    %3 = vector.load %arg1[%c0, %c0_1] : memref<1x512xf32, #tpu.memory_space<vmem>>, vector<1x512xf32>
    %c0_2 = arith.constant 0 : index
    %c0_3 = arith.constant 0 : index
    %4 = vector.load %arg2[%c0_2, %c0_3] : memref<1x512xf32, #tpu.memory_space<vmem>>, vector<1x512xf32>
    %cst = arith.constant 0.000000e+00 : f32
    %5 = vector.broadcast %cst : f32 to vector<1x512xf32>
    %6 = arith.cmpf oge, %3, %5 : vector<1x512xf32>
    %7 = math.absf %3 : vector<1x512xf32>
    %cst_4 = arith.constant 0.000000e+00 : f32
    %8 = vector.broadcast %cst_4 : f32 to vector<1x512xf32>
    %9 = arith.subf %8, %7 : vector<1x512xf32>
    %10 = math.exp %9 : vector<1x512xf32>
    %cst_5 = arith.constant 1.000000e+00 : f32
    %11 = vector.broadcast %cst_5 : f32 to vector<1x512xf32>
    %12 = arith.addf %11, %10 : vector<1x512xf32>
    %13 = math.log %12 : vector<1x512xf32>
    %14 = tpu.reciprocal %12 {approx = true} : vector<1x512xf32> -> vector<1x512xf32>
    %cst_6 = arith.constant 0.000000e+00 : f32
    %15 = vector.broadcast %cst_6 : f32 to vector<1x512xf32>
    %16 = arith.minimumf %3, %15 : vector<1x512xf32>
    %17 = arith.subf %13, %16 : vector<1x512xf32>
    %cst_7 = arith.constant 0.000000e+00 : f32
    %18 = vector.broadcast %cst_7 : f32 to vector<1x512xf32>
    %19 = arith.cmpf ogt, %4, %18 : vector<1x512xf32>
    %20 = arith.xori %19, %6 : vector<1x512xi1>
    %cst_8 = arith.constant dense<true> : vector<1x512xi1>
    %21 = arith.xori %20, %cst_8 : vector<1x512xi1>
    %cst_9 = arith.constant 1.000000e+00 : f32
    %22 = vector.broadcast %cst_9 : f32 to vector<1x512xf32>
    %23 = arith.select %21, %10, %22 : vector<1x512xi1>, vector<1x512xf32>
    %24 = arith.mulf %23, %14 : vector<1x512xf32>
    %25 = arith.mulf %24, %24 : vector<1x512xf32>
    %cst_10 = arith.constant 0.000000e+00 : f32
    %26 = vector.broadcast %cst_10 : f32 to vector<1x512xf32>
    %27 = arith.select %19, %26, %3 : vector<1x512xi1>, vector<1x512xf32>
    %28 = arith.addf %17, %27 : vector<1x512xf32>
    %cst_11 = arith.constant 2.500000e-01 : f32
    %cst_12 = arith.constant 7.500000e-01 : f32
    %29 = vector.broadcast %cst_11 : f32 to vector<1x512xf32>
    %30 = vector.broadcast %cst_12 : f32 to vector<1x512xf32>
    %31 = arith.select %19, %29, %30 : vector<1x512xi1>, vector<1x512xf32>
    %32 = arith.mulf %31, %25 : vector<1x512xf32>
    %33 = arith.mulf %32, %28 : vector<1x512xf32>
    %c0_13 = arith.constant 0 : index
    %c0_14 = arith.constant 0 : index
    %34 = vector.load %arg3[%c0_13, %c0_14] : memref<1x512xf32, #tpu.memory_space<vmem>>, vector<1x512xf32>
    %cst_15 = arith.constant dense<0.000000e+00> : vector<512xf32>
    %35 = vector.multi_reduction <add>, %33, %cst_15 [0] : vector<1x512xf32> to vector<512xf32>
    %36 = vector.shape_cast %35 : vector<512xf32> to vector<1x512xf32>
    %37 = arith.addf %34, %36 : vector<1x512xf32>
    %c0_16 = arith.constant 0 : index
    %c0_17 = arith.constant 0 : index
    %38 = vector.load %arg3[%c0_16, %c0_17] : memref<1x512xf32, #tpu.memory_space<vmem>>, vector<1x512xf32>
    tpu.vector_store %arg3[%c0_16, %c0_17], %37 {strides = array<i32>} : memref<1x512xf32, #tpu.memory_space<vmem>>, vector<1x512xf32>,
    return
  }
  func.func @transform_0(%arg0: i32) -> (i32, i32) {
    %c0_i32 = arith.constant 0 : i32
    %c0_i32_0 = arith.constant 0 : i32
    return %arg0, %c0_i32 : i32, i32
  }
  func.func @transform_1(%arg0: i32) -> (i32, i32) {
    %c0_i32 = arith.constant 0 : i32
    %c0_i32_0 = arith.constant 0 : i32
    return %arg0, %c0_i32 : i32, i32
  }
  func.func @transform_2(%arg0: i32) -> (i32, i32) {
    %c0_i32 = arith.constant 0 : i32
    %c0_i32_0 = arith.constant 0 : i32
    %c0_i32_1 = arith.constant 0 : i32
    return %c0_i32, %c0_i32_0 : i32, i32
  }
}

</mosaic_0001>

<llo_original>
// kernel: focal_loss.1
$region0: #{focal_loss.1}
  #allocation0 [shape = 'u32[]', space=smem, size = 0x4, offset = 0x4, fixed_abs, tag = 'smem constant byte address 0x4 - core index']
  #allocation1 [shape = 'u32[144,128]{1,0:T(1,128)}', space=vmem, size = 0x12000, scoped, tag = 'internal scratch']
  %s0 = inlined_call_operand.vmem [shape: f32[1,512], index: 0, kind: input, shape index: {}]
  %s1 = inlined_call_operand.vmem [shape: f32[1,512], index: 1, kind: input, shape index: {}]
  %s2 = inlined_call_operand.vmem [shape: f32[1,512], index: 2, kind: output, shape index: {}]
  %s3 = sld [smem:[#allocation0]]
  $region22: #{focal_loss.1} parent=0
    _
  %s5 = ssub.s32 1, %s3
  %s6 = scalar_select 0, %s5, %s3
  // Predicated region
  $region2: #{focal_loss.1} parent=0 // pred_check
    _
  $region3: #{focal_loss.1} parent=0 // pred_check_branch
    %8 = sbr.rel (0) target = $region5
  $region4: #{focal_loss.1} parent=0 // pred_region
    _
  $region5: #{focal_loss.1} parent=0 // pred_fallthru
    _
  // Predicated region
  $region6: #{focal_loss.1} parent=0 // pred_check
    _
  $region7: #{focal_loss.1} parent=0 // pred_check_branch
    %10 = sbr.rel (0) target = $region9
  $region8: #{focal_loss.1} parent=0 // pred_region
    _
  $region9: #{focal_loss.1} parent=0 // pred_fallthru
    _
  %p11 = scmp.eq.s32.totalorder 0, 0
  // Predicated region
  $region10: #{focal_loss.1} parent=0 // pred_check
    %p12 = pneg %p11
  $region11: #{focal_loss.1} parent=0 // pred_check_branch
    %14 = sbr.rel (%p12) target = $region13
  $region12: #{focal_loss.1} parent=0 // pred_region
    %v15 = vlaneseq
    %vm16 = vcmp.ge.s32.totalorder %v15, 0
    %vm17 = vcmp.lt.s32.totalorder %v15, 512
    %vm18 = vmand %vm16, %vm17
    %19 = vst.msk [vmem:[%s2] sm:$0xf] %vm18, 0.0
  $region13: #{focal_loss.1} parent=0 // pred_fallthru
    _
  %v20 = vld [vmem:[%s0] sm:$0xf]
  %v21 = vld [vmem:[%s1] sm:$0xf]
  %vm22 = vcmp.ge.f32.partialorder %v20, 0.0
  %v23 = vand.u32 2147483647, %v20
  %v24 = vsub.f32 0.0, %v23
  %v25 = vmul.f32 %v24, 1.442695
  %v26 = vpow.pop %v25
  %v27 = vadd.f32 %v26, 1.0
  %v28 = vlog2.pop %v27
  %v29 = vmul.f32 %v28, 0.6931472
  %v30 = vrcp.pop %v27
  %v31 = vmin.f32 %v20, 0.0
  %v32 = vsub.f32 %v29, %v31
  %vm33 = vcmp.gt.f32.partialorder %v21, 0.0
  %vm34 = vmxor %vm33, %vm22
  %vm35 = vmxor %vm34, 1
  %v36 = vsel %vm35, %v26, 1.0
  %v37 = vmul.f32 %v36, %v30
  %v38 = vmul.f32 %v37, %v37
  %v39 = vsel %vm33, 0.0, %v20
  %v40 = vadd.f32 %v32, %v39
  %v41 = vsel %vm33, 0.25, 0.75
  %v42 = vmul.f32 %v41, %v38
  %v43 = vmul.f32 %v42, %v40
  %v44 = vld [vmem:[%s2] sm:$0xf]
  %v45 = vadd.f32 %v43, 0.0
  %v46 = vadd.f32 %v44, %v45
  %v47 = vlaneseq
  %vm48 = vcmp.ge.s32.totalorder %v47, 0
  %vm49 = vcmp.lt.s32.totalorder %v47, 512
  %vm50 = vmand %vm48, %vm49
  %51 = vst.msk [vmem:[%s2] sm:$0xf] %vm50, %v46
  // Predicated region
  $region14: #{focal_loss.1} parent=0 // pred_check
    _
  $region15: #{focal_loss.1} parent=0 // pred_check_branch
    %53 = sbr.rel (0) target = $region17
  $region16: #{focal_loss.1} parent=0 // pred_region
    _
  $region17: #{focal_loss.1} parent=0 // pred_fallthru
    _
  // Predicated region
  $region18: #{focal_loss.1} parent=0 // pred_check
    _
  $region19: #{focal_loss.1} parent=0 // pred_check_branch
    %55 = sbr.rel (0) target = $region21
  $region20: #{focal_loss.1} parent=0 // pred_region
    _
  $region21: #{focal_loss.1} parent=0 // pred_fallthru
    _

</llo_original>
